<compile_context>
chip_gen: v6e
topology: v6e:2x2x1
jax: 0.10.0
libtpu: 0.0.40
codegen_flags: <defaults>
</compile_context>

<pallas_src>
import functools

import jax
import jax.numpy as jnp
import numpy as np
from jax.experimental import pallas as pl
from jax.experimental.pallas import tpu as pltpu


# ------------------------------- helpers -------------------------------------

def _round_up(x, m):
    return (x + m - 1) // m * m


def num_groups_for(c):
    return c // 4 if c <= 32 else 32


def _conv_w2d(w_dhwio, cin_pad, cout_pad):
    """(3,3,3,Cin,Cout) DHWIO conv weight -> (cout_pad, 27*cin_pad) matrix (tap-major, ci-minor)."""
    _, _, _, ci, co = w_dhwio.shape
    wt = jnp.transpose(w_dhwio, (4, 0, 1, 2, 3))                      # (co, kd, kh, kw, ci)
    wt = jnp.pad(wt, ((0, cout_pad - co), (0, 0), (0, 0), (0, 0), (0, cin_pad - ci)))
    return wt.reshape(cout_pad, 27 * cin_pad)


def _col(v, rows):
    """Per-channel parameter -> zero-padded (rows, 1) column vector (broadcast over lanes)."""
    v = v.reshape(-1, 1)
    return jnp.pad(v, ((0, rows - v.shape[0]), (0, 0)))


@functools.lru_cache(maxsize=None)
def _roll_sign():
    """Calibrate pltpu.roll direction once: +1 if it matches np.roll (out[i] = in[i-shift])."""
    def k(x_ref, o_ref):
        o_ref[...] = pltpu.roll(x_ref[...], shift=1, axis=1)
    x = jnp.broadcast_to(jnp.arange(128, dtype=jnp.float32), (8, 128))
    out = pl.pallas_call(k, out_shape=jax.ShapeDtypeStruct((8, 128), jnp.float32))(x)
    return 1 if float(out[0, 1]) == 0.0 else -1


# ------------------------------- fused kernel --------------------------------

def _fused_block_kernel(*refs, n_batch, c_in, c_out, dim_d, dim_h, dim_w,
                        groups1, groups2, eps, shortcut, roll_sign):
    if shortcut == "identity":
        (x_ref, g1_ref, be1_ref, w1_ref, b1_ref,
         g2_ref, be2_ref, w2_ref, b2_ref, o_ref, patch_ref) = refs
        sw_ref = sb_ref = None
    else:                                                       # "nin" or "conv"
        (x_ref, g1_ref, be1_ref, w1_ref, b1_ref,
         g2_ref, be2_ref, w2_ref, b2_ref, sw_ref, sb_ref, o_ref, patch_ref) = refs

    f32 = jnp.float32
    N, D, H, W = n_batch, dim_d, dim_h, dim_w
    S = D * H * W
    NS = N * S

    # ---- per-tap boundary masks, generated in-kernel (no (27,1,S) HBM array) ----
    lane = jax.lax.broadcasted_iota(jnp.int32, (1, NS), 1)
    pos = lane % S                                              # within-sample flattened position
    dpos, hpos, wpos = pos // (H * W), (pos // W) % H, pos % W

    def axis_masks(p, size):                                    # validity of p+off for off in {-1,0,+1}
        return {-1: (p >= 1).astype(f32), 0: None, 1: (p <= size - 2).astype(f32)}

    dmask, hmask, wmask = axis_masks(dpos, D), axis_masks(hpos, H), axis_masks(wpos, W)
    taps = [(dd, dh, dw) for dd in (-1, 0, 1) for dh in (-1, 0, 1) for dw in (-1, 0, 1)]

    def gn_silu(v, c_real, groups, gamma, beta):
        """GroupNorm (one-pass biased stats, affine) + SiLU on ONE sample's (c_pad, S) tile."""
        cp = v.shape[0]
        cg = c_real // groups
        cnt = float(cg * S)
        ch = jax.lax.broadcasted_iota(jnp.int32, (cp, 1), 0)
        mean_c = jnp.zeros((cp, 1), f32)
        inv_c = jnp.zeros((cp, 1), f32)
        for g in range(groups):                                 # groups is small & static
            vs = v[g * cg:(g + 1) * cg, :]
            s1 = jnp.sum(vs)
            s2 = jnp.sum(vs * vs)                               # fused single pass: E[x], E[x^2]
            m = s1 / cnt
            var = jnp.maximum(s2 / cnt - m * m, 0.0)            # biased variance (torch GN)
            sel = (ch >= g * cg) & (ch < (g + 1) * cg)          # tiny (cp,1) select per group
            mean_c = jnp.where(sel, m, mean_c)
            inv_c = jnp.where(sel, jax.lax.rsqrt(var + eps), inv_c)
        y = (v - mean_c) * (inv_c * gamma) + beta               # gamma/beta pad rows are 0 -> pad rows stay 0
        return y * jax.nn.sigmoid(y)                            # nonlinearity = SiLU

    def conv3x3x3(v, w_ref_, b_ref_):
        """3x3x3 'same' conv over the batch-folded (c_pad, N*S) tile as ONE im2col MXU matmul."""
        cp = v.shape[0]
        for t, (dd, dh, dw) in enumerate(taps):
            if (dd, dh, dw) == (0, 0, 0):
                tap = v                                         # center tap: no roll, all-ones mask
            else:
                t_off = dd * H * W + dh * W + dw                # signed flattened tap offset
                shift = (-t_off if roll_sign == 1 else t_off) % NS
                tap = pltpu.roll(v, shift=shift, axis=1)        # XLU rotate; overlaps VPU/vst
                msk = None
                for part in (dmask[dd], hmask[dh], wmask[dw]):
                    if part is not None:
                        msk = part if msk is None else msk * part
                tap = tap * msk                                 # zero out-of-volume / cross-sample taps
            patch_ref[t * cp:(t + 1) * cp, :] = tap.astype(patch_ref.dtype)
        return jnp.dot(w_ref_[...], patch_ref[0:27 * cp, :],
                       preferred_element_type=jnp.float32) + b_ref_[...]

    # ---- forward: GN1+SiLU -> conv1 -> GN2+SiLU -> conv2 -> shortcut + add ----
    x_s = [x_ref[n].astype(f32) for n in range(N)]              # per-sample (cpin, S) tiles

    h1 = jnp.concatenate([gn_silu(x_s[n], c_in, groups1, g1_ref[...], be1_ref[...])
                          for n in range(N)], axis=1)           # (cpin, N*S), batch folded on lanes
    h1 = conv3x3x3(h1, w1_ref, b1_ref)                          # (cpout, N*S) f32
    # temb is None -> temb_proj branch skipped (matches the reference forward)
    h2 = jnp.concatenate([gn_silu(h1[:, n * S:(n + 1) * S], c_out, groups2,
                                  g2_ref[...], be2_ref[...]) for n in range(N)], axis=1)
    # dropout: identity at inference
    h2 = conv3x3x3(h2, w2_ref, b2_ref)                          # (cpout, N*S) f32

    xv = jnp.concatenate(x_s, axis=1)                           # (cpin, N*S)
    if shortcut == "nin":
        res = jnp.dot(sw_ref[...], xv.astype(sw_ref.dtype),
                      preferred_element_type=jnp.float32) + sb_ref[...]
    elif shortcut == "conv":
        res = conv3x3x3(xv, sw_ref, sb_ref)
    else:                                                       # identity (c_in == c_out)
        res = xv

    out = res + h2                                              # (cpout, N*S) f32; pad rows are 0
    for n in range(N):
        o_ref[n] = out[:, n * S:(n + 1) * S].astype(o_ref.dtype)


# ------------------------------- wrapper --------------------------------------

def temporal_resnet_block_forward(params, x_ncdhw, eps=1e-6, matmul_dtype=jnp.float32):
    N, Cin, D, H, W = x_ncdhw.shape
    Cout = params["out_channels"]
    S = D * H * W
    # bf16 packs 16 rows per sublane tile -> pad channels to 16 so im2col stores stay tile-aligned.
    pad_mult = 16 if matmul_dtype == jnp.bfloat16 else 8
    cpin, cpout = _round_up(Cin, pad_mult), _round_up(Cout, pad_mult)
    cpm = max(cpin, cpout)
    groups1, groups2 = num_groups_for(Cin), num_groups_for(Cout)

    # NCDHW -> (N, C, D*H*W): spatial already last => lane-dense view with a free reshape.
    x = x_ncdhw.reshape(N, Cin, S)
    if cpin > Cin:                                   # tiny one-time pad of channels to a sublane multiple
        x = jnp.pad(x, ((0, 0), (0, cpin - Cin), (0, 0)))

    g1, be1 = _col(params["norm1_gamma"], cpin), _col(params["norm1_beta"], cpin)
    w1 = _conv_w2d(params["conv1_w"], cpin, cpout).astype(matmul_dtype)
    b1 = _col(params["conv1_b"], cpout)
    g2, be2 = _col(params["norm2_gamma"], cpout), _col(params["norm2_beta"], cpout)
    w2 = _conv_w2d(params["conv2_w"], cpout, cpout).astype(matmul_dtype)   # padded to cpout rows
    b2 = _col(params["conv2_b"], cpout)

    inputs = [x, g1, be1, w1, b1, g2, be2, w2, b2]
    if Cin != Cout:
        if params["use_conv_shortcut"]:
            shortcut = "conv"
            inputs += [_conv_w2d(params["conv_shortcut_w"], cpin, cpout).astype(matmul_dtype),
                       _col(params["conv_shortcut_b"], cpout)]
        else:
            shortcut = "nin"
            sw = jnp.pad(params["nin_w"].T, ((0, cpout - Cout), (0, cpin - Cin)))   # (cpout, cpin)
            inputs += [sw.astype(matmul_dtype), _col(params["nin_b"], cpout)]
    else:
        shortcut = "identity"

    def full_spec(a):
        nd = a.ndim
        return pl.BlockSpec(a.shape, lambda i, _nd=nd: (0,) * _nd)

    in_specs = ([pl.BlockSpec((N, cpin, S), lambda i: (0, 0, 0))]
                + [full_spec(a) for a in inputs[1:]])

    kern = functools.partial(
        _fused_block_kernel, n_batch=N, c_in=Cin, c_out=Cout,
        dim_d=D, dim_h=H, dim_w=W, groups1=groups1, groups2=groups2, eps=eps,
        shortcut=shortcut, roll_sign=_roll_sign())

    out = pl.pallas_call(
        kern,
        out_shape=jax.ShapeDtypeStruct((N, cpout, S), x_ncdhw.dtype),
        grid=(1,),                                  # whole batch folded into one step (N*S lanes)
        in_specs=in_specs,
        out_specs=pl.BlockSpec((N, cpout, S), lambda i: (0, 0, 0)),
        scratch_shapes=[pltpu.VMEM((27 * cpm, N * S), matmul_dtype)],   # im2col patch matrix
        compiler_params=pltpu.CompilerParams(dimension_semantics=("arbitrary",)),
    )(*inputs)
    return out[:, :Cout, :].reshape(N, Cout, D, H, W)


# --------------------------- module params -----------------------------------

def init_temporal_resnet_block(key, in_channels, out_channels=None, conv_shortcut=False):
    out_channels = in_channels if out_channels is None else out_channels
    ks = jax.random.split(key, 8)

    def conv_w(k, cin, cout, ksz):
        fan_in = cin * ksz ** 3
        return jax.random.normal(k, (ksz, ksz, ksz, cin, cout), jnp.float32) / jnp.sqrt(fan_in)

    p = {
        "in_channels": in_channels,
        "out_channels": out_channels,
        "use_conv_shortcut": conv_shortcut,
        "norm1_gamma": 1.0 + 0.1 * jax.random.normal(ks[0], (1, in_channels), jnp.float32),
        "norm1_beta": 0.1 * jax.random.normal(ks[1], (1, in_channels), jnp.float32),
        "conv1_w": conv_w(ks[2], in_channels, out_channels, 3),
        "conv1_b": 0.1 * jax.random.normal(ks[3], (1, out_channels), jnp.float32),
        "norm2_gamma": 1.0 + 0.1 * jax.random.normal(ks[4], (1, out_channels), jnp.float32),
        "norm2_beta": 0.1 * jax.random.normal(ks[5], (1, out_channels), jnp.float32),
        "conv2_w": conv_w(ks[6], out_channels, out_channels, 3),
        "conv2_b": 0.1 * jax.random.normal(ks[7], (1, out_channels), jnp.float32),
    }
    if in_channels != out_channels:
        k1, k2 = jax.random.split(jax.random.fold_in(key, 99))
        if conv_shortcut:
            p["conv_shortcut_w"] = conv_w(k1, in_channels, out_channels, 3)
            p["conv_shortcut_b"] = 0.1 * jax.random.normal(k2, (1, out_channels), jnp.float32)
        else:
            p["nin_w"] = jax.random.normal(k1, (in_channels, out_channels), jnp.float32) / jnp.sqrt(in_channels)
            p["nin_b"] = 0.1 * jax.random.normal(k2, (1, out_channels), jnp.float32)
    return p


# --------------------------- pure-JAX reference ------------------------------

def _reference_forward(params, x_ncdhw, eps=1e-6):
    x = jnp.transpose(x_ncdhw, (0, 2, 3, 4, 1))

    def gn(z, gamma, beta, groups):
        N, D, H, W, C = z.shape
        zg = z.reshape(N, D, H, W, groups, C // groups)
        m = zg.mean(axis=(1, 2, 3, 5), keepdims=True)
        v = ((zg - m) ** 2).mean(axis=(1, 2, 3, 5), keepdims=True)
        zn = ((zg - m) / jnp.sqrt(v + eps)).reshape(N, D, H, W, C)
        return zn * gamma.reshape(1, 1, 1, 1, C) + beta.reshape(1, 1, 1, 1, C)

    def silu(z):
        return z * jax.nn.sigmoid(z)

    def conv(z, w, b):
        y = jax.lax.conv_general_dilated(
            z, w, window_strides=(1, 1, 1), padding=((1, 1), (1, 1), (1, 1)),
            dimension_numbers=("NDHWC", "DHWIO", "NDHWC"))
        return y + b.reshape(1, 1, 1, 1, -1)

    h = conv(silu(gn(x, params["norm1_gamma"], params["norm1_beta"],
                     num_groups_for(params["in_channels"]))),
             params["conv1_w"], params["conv1_b"])
    h = conv(silu(gn(h, params["norm2_gamma"], params["norm2_beta"],
                     num_groups_for(params["out_channels"]))),
             params["conv2_w"], params["conv2_b"])
    if params["in_channels"] != params["out_channels"]:
        if params["use_conv_shortcut"]:
            x = conv(x, params["conv_shortcut_w"], params["conv_shortcut_b"])
        else:
            x = jnp.einsum("ndhwc,co->ndhwo", x, params["nin_w"]) \
                + params["nin_b"].reshape(1, 1, 1, 1, -1)
    return jnp.transpose(x + h, (0, 4, 1, 2, 3))


# --------------------------- main --------------------------------------------

if __name__ == "__main__":
    key = jax.random.PRNGKey(0)
    k_x, k_p, k_p2, k_p3 = jax.random.split(key, 4)

    # PyTorch NCDHW input: (batch=2, in_channels=4, T=4, H=8, W=8) -> N*DHW = 512 lanes/step
    N, Cin, D, H, W = 2, 4, 4, 8, 8
    Cout = 8
    x = jax.random.normal(k_x, (N, Cin, D, H, W), jnp.float32)

    # case 1: in_channels != out_channels -> nin_shortcut (1x1x1 conv) path
    params = init_temporal_resnet_block(k_p, in_channels=Cin, out_channels=Cout,
                                        conv_shortcut=False)
    out = jax.block_until_ready(temporal_resnet_block_forward(params, x))
    assert out.shape == (N, Cout, D, H, W)
    ref = _reference_forward(params, x)
    np.testing.assert_allclose(np.asarray(out), np.asarray(ref), rtol=1e-4, atol=1e-4)

    # case 2: in_channels == out_channels -> identity shortcut path
    params2 = init_temporal_resnet_block(k_p2, in_channels=Cin)
    out2 = jax.block_until_ready(temporal_resnet_block_forward(params2, x))
    ref2 = _reference_forward(params2, x)
    np.testing.assert_allclose(np.asarray(out2), np.asarray(ref2), rtol=1e-4, atol=1e-4)

    # case 3: conv_shortcut=True -> 3x3x3 conv shortcut path
    params3 = init_temporal_resnet_block(k_p3, in_channels=Cin, out_channels=Cout,
                                         conv_shortcut=True)
    out3 = jax.block_until_ready(temporal_resnet_block_forward(params3, x))
    ref3 = _reference_forward(params3, x)
    np.testing.assert_allclose(np.asarray(out3), np.asarray(ref3), rtol=1e-4, atol=1e-4)

    # case 4: bf16 MXU operands with f32 accumulation (v5e/v6e fast path) -- loose tolerance
    out_bf16 = jax.block_until_ready(
        temporal_resnet_block_forward(params, x, matmul_dtype=jnp.bfloat16))
    np.testing.assert_allclose(np.asarray(out_bf16), np.asarray(ref), rtol=1e-1, atol=1e-1)

    print("KERNEL_OK")
</pallas_src>

<mosaic_0001>
module attributes {stable_mosaic.version = 11 : i64} {
  func.func @k(%arg0: memref<8x128xf32, #tpu.memory_space<vmem>>, %arg1: memref<8x128xf32, #tpu.memory_space<vmem>>) attributes {dimension_semantics = [], scalar_prefetch = 0 : i64, scratch_operands = 0 : i64, tpu.core_type = #tpu.core_type<tc>} {
    %c0 = arith.constant 0 : index
    %c0_0 = arith.constant 0 : index
    %0 = vector.load %arg0[%c0, %c0_0] : memref<8x128xf32, #tpu.memory_space<vmem>>, vector<8x128xf32>
    %c1_i32 = arith.constant 1 : i32
    %1 = tpu.dynamic_rotate %0 by %c1_i32 dim 1 : vector<8x128xf32>, i32 -> vector<8x128xf32>
    %c0_1 = arith.constant 0 : index
    %c0_2 = arith.constant 0 : index
    %2 = vector.load %arg1[%c0_1, %c0_2] : memref<8x128xf32, #tpu.memory_space<vmem>>, vector<8x128xf32>
    tpu.vector_store %arg1[%c0_1, %c0_2], %1 {strides = array<i32>} : memref<8x128xf32, #tpu.memory_space<vmem>>, vector<8x128xf32>,
    return
  }
}

</mosaic_0001>

<llo_original>
// kernel: tpu_custom_call.1
$region0: #{tpu_custom_call.1}
  #allocation0 [shape = 'u32[]', space=smem, size = 0x4, offset = 0x4, fixed_abs, tag = 'smem constant byte address 0x4 - core index']
  #allocation1 [shape = 'u32[144,128]{1,0:T(1,128)}', space=vmem, size = 0x12000, scoped, tag = 'internal scratch']
  %s0 = inlined_call_operand.hbm [shape: f32[8,128], index: 0, kind: input, shape index: {}]
  %s1 = inlined_call_operand.hbm [shape: f32[8,128], index: 1, kind: output, shape index: {}]
  %s2 = sld [smem:[#allocation0]]
  $region18: #{tpu_custom_call.1} parent=0
    _
  %s4 = ssub.s32 1, %s2
  %s5 = scalar_select 0, %s4, %s2
  $region1: #{tpu_custom_call.1} parent=0
    #allocation2 [shape = 'u8[4096]{0}', space=vmem, size = 0x1000, scoped, tag = 'input window, operand 0, single buffered']
    #allocation3 [shape = 's32[1]{0}', space=sflag, size = 0x4, scoped, tag = 'scoped memory for tpu_custom_call.1']
    #allocation4 [shape = 's32[1]{0}', space=sflag, size = 0x4, scoped, tag = 'scoped memory for tpu_custom_call.1']
    #allocation5 [shape = 'u8[4096]{0}', space=vmem, size = 0x1000, scoped, tag = 'output window, operand 0, single buffered']
    %6 = vsyncpa [#allocation3], 0
    %7 = vsyncpa [#allocation4], 0
    // Predicated region
    $region2: #{tpu_custom_call.1} parent=1 // pred_check
      _
    $region3: #{tpu_custom_call.1} parent=1 // pred_check_branch
      %9 = sbr.rel (0) target = $region5
    $region4: #{tpu_custom_call.1} parent=1 // pred_region
      %s11 = ssub.s32 128, 128
      %12 = vsyncadd [#allocation3], %s11
      %s14 = sshll.u32 [#allocation2], 4
      %s15 = int_to_ptr.vmem [resolvable:$true] %s14
      %17 = dma.hbm_to_vmem [thread:$0]  %s0, 128, %s15, [#allocation3]
    $region5: #{tpu_custom_call.1} parent=1 // pred_fallthru
      _
    // Predicated region
    $region6: #{tpu_custom_call.1} parent=1 // pred_check
      _
    $region7: #{tpu_custom_call.1} parent=1 // pred_check_branch
      %19 = sbr.rel (0) target = $region9
    $region8: #{tpu_custom_call.1} parent=1 // pred_region
      %20 = dma.done [#allocation3], 128
    $region9: #{tpu_custom_call.1} parent=1 // pred_fallthru
      _
    %v21 = vld [vmem:[#allocation2] sm:$0xff]
    %22 = vrot.lane.b32.xlu0 %v21, 1
    %v23 = vpop.permute.xlu0 %22
    %24 = vst [vmem:[#allocation5] sm:$0xff] %v23
    // Predicated region
    $region10: #{tpu_custom_call.1} parent=1 // pred_check
      _
    $region11: #{tpu_custom_call.1} parent=1 // pred_check_branch
      %26 = sbr.rel (0) target = $region13
    $region12: #{tpu_custom_call.1} parent=1 // pred_region
      %s28 = ssub.s32 128, 128
      %29 = vsyncadd [#allocation4], %s28
      %s31 = sshll.u32 [#allocation5], 4
      %s32 = int_to_ptr.vmem [resolvable:$true] %s31
      %34 = dma.vmem_to_hbm [thread:$0]  %s32, 128, %s1, [#allocation4]
    $region13: #{tpu_custom_call.1} parent=1 // pred_fallthru
      _
    // Predicated region
    $region14: #{tpu_custom_call.1} parent=1 // pred_check
      _
    $region15: #{tpu_custom_call.1} parent=1 // pred_check_branch
      %36 = sbr.rel (0) target = $region17
    $region16: #{tpu_custom_call.1} parent=1 // pred_region
      %37 = dma.done [#allocation4], 128
    $region17: #{tpu_custom_call.1} parent=1 // pred_fallthru
      _
    %38 = vsyncpa [#allocation3], 1
    %39 = vsyncpa [#allocation4], 1

</llo_original>
